<compile_context>
chip_gen: v7x
topology: tpu7x:2x2x1
jax: 0.10.0
libtpu: 0.0.40
codegen_flags: <defaults>
</compile_context>

<pallas_src>
import jax
import jax.numpy as jnp
from jax.experimental import pallas as pl
from jax.experimental.pallas import tpu as pltpu

_LANE = 128                      # TPU lane width (last dim of every tile)
_TARGET_BLOCK_BYTES = 4 << 20    # ~4 MiB per block (dtype-aware row count)
_VMEM_LIMIT_BYTES = 32 << 20     # covers v5e's 16 MiB default; safe on v6e/v7x
_P = 0.0                         # hard-coded in the PyTorch module


def _c_relu_kernel(x_ref, o_ref):
    x = x_ref[...]
    # p == 0.0  =>  bernoulli(mask * p) == 0, so output = unmask * input.
    # Single VPU multiply; preserves PyTorch NaN / signed-zero behaviour.
    o_ref[...] = x * (x > 0).astype(x.dtype)


def _dim_semantics():
    """PARALLEL everywhere; CORE_PARALLEL on v7x so both TensorCores shard
    the grid (plain "parallel" has near-zero codegen effect on 2-TC chips)."""
    parallel = getattr(pltpu, "PARALLEL", "parallel")
    core_parallel = getattr(pltpu, "CORE_PARALLEL", parallel)
    try:
        kind = jax.devices()[0].device_kind.lower()
    except Exception:  # pragma: no cover - device query should not fail
        kind = ""
    if "v7" in kind or "7x" in kind:
        return (core_parallel,)
    return (parallel,)


def c_relu(x):
    """Elementwise C_ReLU forward (p = 0.0). Works for any shape/float dtype."""
    # The stochastic (bernoulli) branch is only dead because p == 0.0; guard
    # so a future nonzero p is not silently dropped.
    assert _P == 0.0, "c_relu kernel is specialized for p == 0.0"

    orig_shape = x.shape
    dtype = x.dtype
    n = x.size
    if n == 0:
        return x

    itemsize = jnp.dtype(dtype).itemsize
    tile_rows = max(8, _TARGET_BLOCK_BYTES // (_LANE * itemsize))  # 8192 @ f32

    compiler_params = pltpu.CompilerParams(
        dimension_semantics=_dim_semantics(),
        vmem_limit_bytes=_VMEM_LIMIT_BYTES,
    )

    flat = x.reshape(-1)  # metadata-only for contiguous inputs

    if n % _LANE == 0:
        # Fast path: lane-dense 2-D view, no padding / extra HBM copies.
        rows = n // _LANE
        x2d = flat.reshape(rows, _LANE)
        tr = min(rows, tile_rows)
        out2d = pl.pallas_call(
            _c_relu_kernel,
            out_shape=jax.ShapeDtypeStruct((rows, _LANE), dtype),
            grid=(pl.cdiv(rows, tr),),
            in_specs=[pl.BlockSpec((tr, _LANE), lambda i: (i, 0))],
            out_specs=pl.BlockSpec((tr, _LANE), lambda i: (i, 0)),
            compiler_params=compiler_params,
        )(x2d)
        return out2d.reshape(orig_shape)

    # Ragged path (n not a multiple of 128): process the UNPADDED flat buffer
    # with 1-D blocks; Pallas masks the ragged final block, so no wrapper-side
    # jnp.pad / slice round-trips through HBM.
    block = min(n, tile_rows * _LANE)  # multiple of 128 unless it is the full array
    out = pl.pallas_call(
        _c_relu_kernel,
        out_shape=jax.ShapeDtypeStruct((n,), dtype),
        grid=(pl.cdiv(n, block),),
        in_specs=[pl.BlockSpec((block,), lambda i: (i,))],
        out_specs=pl.BlockSpec((block,), lambda i: (i,)),
        compiler_params=compiler_params,
    )(flat)
    return out.reshape(orig_shape)


if __name__ == "__main__":
    key = jax.random.PRNGKey(0)
    # NCHW input, typical CIFAR conv activation: batch=2, C=4, H=W=16
    x = jax.random.normal(key, (2, 4, 16, 16), dtype=jnp.float32)

    out = c_relu(x)
    out = jax.block_until_ready(out)

    # Reference: with p = 0.0 the forward reduces to unmask * input
    ref = x * (x > 0).astype(x.dtype)
    assert out.shape == x.shape and out.dtype == x.dtype
    assert jnp.allclose(out, ref, atol=0.0, rtol=0.0)

    print("KERNEL_OK")
</pallas_src>

<mosaic_0001>
module attributes {stable_mosaic.version = 11 : i64} {
  func.func @_c_relu_kernel(%arg0: i32, %arg1: memref<16x128xf32, #tpu.memory_space<vmem>>, %arg2: memref<16x128xf32, #tpu.memory_space<vmem>>) attributes {dimension_semantics = [#tpu.dimension_semantics<parallel>], iteration_bounds = array<i64: 1>, scalar_prefetch = 0 : i64, scratch_operands = 0 : i64, tpu.core_type = #tpu.core_type<tc>, window_params = [{transform_indices = @transform_0, window_bounds = array<i64: 16, 128>}, {transform_indices = @transform_1, window_bounds = array<i64: 16, 128>}]} {
    %c0 = arith.constant 0 : index
    %c0_0 = arith.constant 0 : index
    %0 = vector.load %arg1[%c0, %c0_0] : memref<16x128xf32, #tpu.memory_space<vmem>>, vector<16x128xf32>
    %cst = arith.constant 0.000000e+00 : f32
    %1 = vector.broadcast %cst : f32 to vector<16x128xf32>
    %2 = arith.cmpf ogt, %0, %1 : vector<16x128xf32>
    %3 = arith.extui %2 : vector<16x128xi1> to vector<16x128xi32>
    %4 = arith.sitofp %3 : vector<16x128xi32> to vector<16x128xf32>
    %5 = arith.mulf %0, %4 : vector<16x128xf32>
    %c0_1 = arith.constant 0 : index
    %c0_2 = arith.constant 0 : index
    %6 = vector.load %arg2[%c0_1, %c0_2] : memref<16x128xf32, #tpu.memory_space<vmem>>, vector<16x128xf32>
    tpu.vector_store %arg2[%c0_1, %c0_2], %5 {strides = array<i32>} : memref<16x128xf32, #tpu.memory_space<vmem>>, vector<16x128xf32>,
    return
  }
  func.func @transform_0(%arg0: i32) -> (i32, i32) {
    %c0_i32 = arith.constant 0 : i32
    %c0_i32_0 = arith.constant 0 : i32
    return %arg0, %c0_i32 : i32, i32
  }
  func.func @transform_1(%arg0: i32) -> (i32, i32) {
    %c0_i32 = arith.constant 0 : i32
    %c0_i32_0 = arith.constant 0 : i32
    return %arg0, %c0_i32 : i32, i32
  }
}

</mosaic_0001>

<llo_original>
// kernel: tpu_custom_call.1
$region0: #{tpu_custom_call.1}
  #allocation0 [shape = 'u32[]', space=smem, size = 0x4, offset = 0x4, fixed_abs, tag = 'smem constant byte address 0x4 - core index']
  #allocation1 [shape = 'u32[144,128]{1,0:T(1,128)}', space=vmem, size = 0x12000, scoped, tag = 'internal scratch']
  %s0 = inlined_call_operand.hbm [shape: f32[16,128], index: 0, kind: input, shape index: {}]
  %s1 = inlined_call_operand.hbm [shape: f32[16,128], index: 1, kind: output, shape index: {}]
  %s2 = sld [smem:[#allocation0]]
  $region18: #{tpu_custom_call.1} parent=0
    _
  %s4 = ssub.s32 1, %s2
  %s5 = scalar_select 0, %s4, %s2
  $region1: #{tpu_custom_call.1} parent=0
    #allocation2 [shape = 'u8[8192]{0}', space=vmem, size = 0x2000, scoped, tag = 'input window, operand 0, single buffered']
    #allocation3 [shape = 's32[1]{0}', space=sflag, size = 0x4, scoped, tag = 'scoped memory for tpu_custom_call.1']
    #allocation4 [shape = 's32[1]{0}', space=sflag, size = 0x4, scoped, tag = 'scoped memory for tpu_custom_call.1']
    #allocation5 [shape = 'u8[8192]{0}', space=vmem, size = 0x2000, scoped, tag = 'output window, operand 0, single buffered']
    %6 = vsyncpa [#allocation3], 0
    %7 = vsyncpa [#allocation4], 0
    // Predicated region
    $region2: #{tpu_custom_call.1} parent=1 // pred_check
      _
    $region3: #{tpu_custom_call.1} parent=1 // pred_check_branch
      %9 = sbr.rel (0) target = $region5
    $region4: #{tpu_custom_call.1} parent=1 // pred_region
      %s11 = ssub.s32 256, 256
      %12 = vsyncadd [#allocation3], %s11
      %s13 = sshll.u32 [#allocation2], 4
      %s14 = int_to_ptr.vmem [resolvable:$true] %s13
      %19 = dma.hbm_to_vmem [thread:$0]  %s0, 256, %s14, [#allocation3], 128, 128, 8
    $region5: #{tpu_custom_call.1} parent=1 // pred_fallthru
      _
    // Predicated region
    $region6: #{tpu_custom_call.1} parent=1 // pred_check
      _
    $region7: #{tpu_custom_call.1} parent=1 // pred_check_branch
      %21 = sbr.rel (0) target = $region9
    $region8: #{tpu_custom_call.1} parent=1 // pred_region
      %22 = dma.done [#allocation3], 256
    $region9: #{tpu_custom_call.1} parent=1 // pred_fallthru
      _
    %v23 = vld [vmem:[#allocation2] sm:$0xff]
    %v24 = vld [vmem:[#allocation2 + $0x8] sm:$0xff]
    %vm25 = vcmp.gt.f32.partialorder %v23, 0.0
    %vm26 = vcmp.gt.f32.partialorder %v24, 0.0
    %v27 = vsel %vm25, 1, 0
    %v28 = vsel %vm26, 1, 0
    %v29 = vcvt.s32.f32 %v27
    %v30 = vcvt.s32.f32 %v28
    %v31 = vmul.f32 %v23, %v29
    %v32 = vmul.f32 %v24, %v30
    %33 = vst [vmem:[#allocation5] sm:$0xff] %v31
    %34 = vst [vmem:[#allocation5 + $0x8] sm:$0xff] %v32
    // Predicated region
    $region10: #{tpu_custom_call.1} parent=1 // pred_check
      _
    $region11: #{tpu_custom_call.1} parent=1 // pred_check_branch
      %36 = sbr.rel (0) target = $region13
    $region12: #{tpu_custom_call.1} parent=1 // pred_region
      %s38 = ssub.s32 256, 256
      %39 = vsyncadd [#allocation4], %s38
      %s40 = sshll.u32 [#allocation5], 4
      %s41 = int_to_ptr.vmem [resolvable:$true] %s40
      %46 = dma.vmem_to_hbm [thread:$0]  %s41, 256, %s1, [#allocation4], 128, 128, 8
    $region13: #{tpu_custom_call.1} parent=1 // pred_fallthru
      _
    // Predicated region
    $region14: #{tpu_custom_call.1} parent=1 // pred_check
      _
    $region15: #{tpu_custom_call.1} parent=1 // pred_check_branch
      %48 = sbr.rel (0) target = $region17
    $region16: #{tpu_custom_call.1} parent=1 // pred_region
      %49 = dma.done [#allocation4], 256
    $region17: #{tpu_custom_call.1} parent=1 // pred_fallthru
      _
    %50 = vsyncpa [#allocation3], 1
    %51 = vsyncpa [#allocation4], 1

</llo_original>
